<compile_context>
chip_gen: v5e
topology: v5e:2x2
jax: 0.10.0
libtpu: 0.0.40
codegen_flags: <defaults>
</compile_context>

<pallas_src>
import math
import functools

import numpy as np
import jax
import jax.numpy as jnp
from jax import lax
from jax.experimental import pallas as pl
from jax.experimental.pallas import tpu as pltpu


def _round_up(x, m):
    return ((x + m - 1) // m) * m


# ----------------------------------------------------------------------------
# Pallas kernel: one (batch, M-tile) step of  O[b] = Wt @ A[b] + bias_col
# (the 1/B scale is pre-folded into Wt by the wrapper).
# ----------------------------------------------------------------------------
def _convt_matmul_kernel(wt_ref, at_ref, bias_ref, o_ref):
    # wt_ref: (C_out, Kd) resident; at_ref: (1, Kd, TM); o_ref: (1, C_out, TM) lane-dense.
    acc = jnp.dot(wt_ref[...], at_ref[0], preferred_element_type=jnp.float32)
    # NOTE: Mosaic's default f32 x f32 dot matches the f32 NumPy reference to <1e-4 here
    # (both configs asserted below); pin precision explicitly if bit-parity is required.
    o_ref[0] = (acc + bias_ref[...]).astype(o_ref.dtype)


def _pick_m_tiling(HW, Kd, C_out, budget_bytes=10 * 1024 * 1024):
    """Pick (TM, n_m, HWp): lane-dense M tile, #tiles per batch, padded HW.

    VMEM-aware: per-step bytes ~= 2*rup(Kd,8)*rup(TM,128)*4     (A tile, double buffered)
                               +  2*rup(C_out,8)*rup(TM,128)*4  (out tile, double buffered)
                               +  small resident Wt/bias.
    Single full-HW block per batch whenever it fits: the batch grid axis already gives
    v7x's two TensorCores parallel work, while single-TC v5e/v6e would only pay extra
    per-step pipeline overhead (~0.35-0.7 us) for a forced M split.
    """
    kd_rows = _round_up(Kd, 8)
    co_rows = _round_up(C_out, 8)
    fixed = co_rows * _round_up(Kd, 128) * 4 + co_rows * 128 * 4   # Wt + bias (resident)

    def per_step(tm):
        lanes = _round_up(tm, 128)
        return 2 * (kd_rows + co_rows) * lanes * 4 + fixed

    if per_step(HW) <= budget_bytes:
        return HW, 1, HW
    lanes_max = (budget_bytes - fixed) // (8 * (kd_rows + co_rows))
    tm = max(128, (lanes_max // 128) * 128)
    n_m = pl.cdiv(HW, tm)
    # TODO(synk): if Kd itself gets very large, tile the contraction with an f32
    # accumulator scratch instead of shrinking TM further.
    return tm, n_m, tm * n_m


def convt_matmul(wt, at, bias_col, *, tm, n_m):
    """wt: (C_out, Kd), at: (B, Kd, HWp), bias_col: (C_out, 1)
       -> (B, C_out, HWp) with out[b] = wt @ at[b] + bias."""
    C_out, Kd = wt.shape
    B, _, HWp = at.shape
    return pl.pallas_call(
        _convt_matmul_kernel,
        out_shape=jax.ShapeDtypeStruct((B, C_out, HWp), jnp.float32),
        grid_spec=pltpu.PrefetchScalarGridSpec(
            num_scalar_prefetch=0,
            grid=(B, n_m),
            in_specs=[
                pl.BlockSpec((C_out, Kd), lambda b, m: (0, 0)),     # tiny weight, resident
                pl.BlockSpec((1, Kd, tm), lambda b, m: (b, 0, m)),  # K on sublanes, M on lanes
                pl.BlockSpec((C_out, 1), lambda b, m: (0, 0)),      # bias column
            ],
            out_specs=pl.BlockSpec((1, C_out, tm), lambda b, m: (b, 0, m)),  # final layout
        ),
        compiler_params=pltpu.CompilerParams(
            dimension_semantics=("parallel", "parallel"),
            vmem_limit_bytes=32 * 1024 * 1024),
    )(wt, at, bias_col)


# ----------------------------------------------------------------------------
# Forward wrapper: strided-slice im2col (fused XLA), contraction+scale+bias in Pallas.
# ----------------------------------------------------------------------------
@functools.partial(jax.jit,
                   static_argnames=("stride", "padding", "output_padding", "dilation"))
def custom_conv_transposed2d_forward(x, weight, bias, *, stride=1, padding=0,
                                     output_padding=0, dilation=1):
    B, C_in, H, W = x.shape
    _, C_out, KH, KW = weight.shape
    H_out = (H - 1) * stride - 2 * padding + dilation * (KH - 1) + output_padding + 1
    W_out = (W - 1) * stride - 2 * padding + dilation * (KW - 1) + output_padding + 1
    HW = H_out * W_out
    Kd = C_in * KH * KW

    xf = x.astype(jnp.float32)

    # The reference indexes the PADDED input at h_in = h_out*stride - dil*(KH-1) + kr*dil
    # but bounds-checks against the UNPADDED H/W. Equivalently: read the UNPADDED input
    # at h_idx = h_in - padding, valid iff 0 <= h_idx < H - padding (reads with
    # h_in < padding land in the zero pad region).  Same along W.
    # Each (kr, kc) tap is then one strided slice of a zero-extended input + static mask.
    Lh = (KH - 1) * dilation + padding
    Lw = (KW - 1) * dilation + padding
    Rh = max(0, (H_out - 1) * stride - padding + 1 - H)
    Rw = max(0, (W_out - 1) * stride - padding + 1 - W)
    xe = jnp.pad(xf, ((0, 0), (0, 0), (Lh, Rh), (Lw, Rw)))

    h_out_idx = np.arange(H_out)
    w_out_idx = np.arange(W_out)

    patches = []
    for kr in range(KH):
        ch = (kr - (KH - 1)) * dilation - padding
        h_idx = h_out_idx * stride + ch
        h_valid = (h_idx >= 0) & (h_idx < H - padding)       # quirk: unpadded bound
        for kc in range(KW):
            cw = (kc - (KW - 1)) * dilation - padding
            w_idx = w_out_idx * stride + cw
            w_valid = (w_idx >= 0) & (w_idx < W - padding)   # quirk: unpadded bound
            g = lax.slice(
                xe,
                (0, 0, ch + Lh, cw + Lw),
                (B, C_in,
                 ch + Lh + (H_out - 1) * stride + 1,
                 cw + Lw + (W_out - 1) * stride + 1),
                strides=(1, 1, stride, stride))              # (B, C_in, H_out, W_out)
            mask = h_valid[:, None] & w_valid[None, :]       # static (H_out, W_out) mask
            patches.append(jnp.where(mask, g, 0.0))          # where, not mul (NaN-safe)

    # (B, C_in, KH*KW, H_out, W_out) -> (B, Kd, HW); row index = ci*KH*KW + kr*KW + kc.
    At = jnp.stack(patches, axis=2).reshape(B, Kd, HW)

    TM, n_m, HWp = _pick_m_tiling(HW, Kd, C_out)
    if HWp != HW:
        At = jnp.pad(At, ((0, 0), (0, 0), (0, HWp - HW)))

    # weight (C_in, C_out, KH, KW) -> (C_out, Kd); fold the 1/B scale into it once.
    Wt = (jnp.transpose(weight, (1, 0, 2, 3)).reshape(C_out, Kd).astype(jnp.float32)
          * (1.0 / B))
    if bias is None:
        bias_col = jnp.zeros((C_out, 1), dtype=jnp.float32)
    else:
        bias_col = bias.reshape(C_out, 1).astype(jnp.float32)

    out = convt_matmul(Wt, At, bias_col, tm=TM, n_m=n_m)     # (B, C_out, HWp), final layout
    if HWp != HW:
        out = out[:, :, :HW]
    return out.reshape(B, C_out, H_out, W_out)               # no transpose needed


# ----------------------------------------------------------------------------
# Brute-force NumPy reference (mirrors the PyTorch loops exactly)
# ----------------------------------------------------------------------------
def ref_forward_np(x, w, b, stride, padding, output_padding, dilation):
    x = np.asarray(x, np.float32)
    w = np.asarray(w, np.float32)
    b = None if b is None else np.asarray(b, np.float32)
    B, C_in, H, W = x.shape
    _, C_out, KH, KW = w.shape
    H_out = (H - 1) * stride - 2 * padding + dilation * (KH - 1) + output_padding + 1
    W_out = (W - 1) * stride - 2 * padding + dilation * (KW - 1) + output_padding + 1
    xp = np.pad(x, ((0, 0), (0, 0), (padding, padding), (padding, padding)))
    out = np.zeros((B, C_out, H_out, W_out), np.float32)
    for bb in range(B):
        for co in range(C_out):
            for ho in range(H_out):
                for wo in range(W_out):
                    v = 0.0
                    h0 = ho * stride - dilation * (KH - 1)
                    w0 = wo * stride - dilation * (KW - 1)
                    for ci in range(C_in):
                        for kr in range(KH):
                            for kc in range(KW):
                                hi = h0 + kr * dilation
                                wi = w0 + kc * dilation
                                if 0 <= hi < H and 0 <= wi < W:
                                    v += xp[bb, ci, hi, wi] * w[ci, co, kr, kc]
                    out[bb, co, ho, wo] = v
    out /= B
    if b is not None:
        out += b.reshape(1, -1, 1, 1)
    return out


def init_params(key, in_channels, out_channels, kernel_size):
    """Deterministic kaiming_uniform(a=sqrt(5)) style init (matches the module's shapes)."""
    kw, kb = jax.random.split(key)
    w_shape = (in_channels, out_channels, kernel_size, kernel_size)  # groups=1
    fan_in = out_channels * kernel_size * kernel_size                # PyTorch fan_in here
    gain = math.sqrt(2.0 / (1.0 + 5.0))
    w_bound = gain * math.sqrt(3.0 / fan_in)
    b_bound = 1.0 / math.sqrt(fan_in)
    weight = jax.random.uniform(kw, w_shape, jnp.float32, -w_bound, w_bound)
    bias = jax.random.uniform(kb, (out_channels,), jnp.float32, -b_bound, b_bound)
    return weight, bias


if __name__ == "__main__":
    key = jax.random.PRNGKey(0)
    k1, k2, k3 = jax.random.split(key, 3)

    # ---- tiny config: verify Pallas output against brute-force reference ----
    x_s = jax.random.normal(k1, (2, 2, 4, 4), jnp.float32)
    w_s, b_s = init_params(k2, in_channels=2, out_channels=3, kernel_size=3)
    out_s = jax.block_until_ready(custom_conv_transposed2d_forward(
        x_s, w_s, b_s, stride=2, padding=1, output_padding=1, dilation=1))
    ref_s = ref_forward_np(x_s, w_s, b_s, stride=2, padding=1, output_padding=1, dilation=1)
    np.testing.assert_allclose(np.asarray(out_s), ref_s, rtol=1e-4, atol=1e-4)

    # ---- main config: batch=2, in_ch=4, out_ch=8, 16x16 spatial (now validated too) ----
    kx, kp = jax.random.split(k3)
    x = jax.random.normal(kx, (2, 4, 16, 16), jnp.float32)
    weight, bias = init_params(kp, in_channels=4, out_channels=8, kernel_size=3)
    out = jax.block_until_ready(custom_conv_transposed2d_forward(
        x, weight, bias, stride=2, padding=1, output_padding=1, dilation=1))
    assert out.shape == (2, 8, 32, 32), out.shape
    ref = ref_forward_np(x, weight, bias, stride=2, padding=1, output_padding=1, dilation=1)
    np.testing.assert_allclose(np.asarray(out), ref, rtol=1e-4, atol=1e-4)

    print("KERNEL_OK")
</pallas_src>

<mosaic_0001>
module attributes {stable_mosaic.version = 11 : i64} {
  func.func @_convt_matmul_kernel(%arg0: i32, %arg1: i32, %arg2: memref<3x18xf32, #tpu.memory_space<vmem>>, %arg3: memref<1x18x64xf32, #tpu.memory_space<vmem>>, %arg4: memref<3x1xf32, #tpu.memory_space<vmem>>, %arg5: memref<1x3x64xf32, #tpu.memory_space<vmem>>) attributes {dimension_semantics = [#tpu.dimension_semantics<parallel>, #tpu.dimension_semantics<parallel>], iteration_bounds = array<i64: 2, 1>, scalar_prefetch = 0 : i64, scratch_operands = 0 : i64, tpu.core_type = #tpu.core_type<tc>, window_params = [{pipeline_mode = #tpu.pipeline_mode<synchronous>, transform_indices = @transform_0, window_bounds = array<i64: 3, 18>}, {transform_indices = @transform_1, window_bounds = array<i64: 1, 18, 64>}, {pipeline_mode = #tpu.pipeline_mode<synchronous>, transform_indices = @transform_2, window_bounds = array<i64: 3, 1>}, {transform_indices = @transform_3, window_bounds = array<i64: 1, 3, 64>}]} {
    %c0 = arith.constant 0 : index
    %c0_0 = arith.constant 0 : index
    %0 = vector.load %arg2[%c0, %c0_0] : memref<3x18xf32, #tpu.memory_space<vmem>>, vector<3x18xf32>
    %c0_1 = arith.constant 0 : index
    %c0_2 = arith.constant 0 : index
    %c0_3 = arith.constant 0 : index
    %1 = vector.load %arg3[%c0_1, %c0_2, %c0_3] : memref<1x18x64xf32, #tpu.memory_space<vmem>>, vector<1x18x64xf32>
    %2 = vector.shape_cast %1 : vector<1x18x64xf32> to vector<18x64xf32>
    %cst = arith.constant dense<0.000000e+00> : vector<3x64xf32>
    %3 = tpu.matmul %0, %2, %cst {dimension_numbers = #tpu.dot_dimension_numbers<[1], [0], [0], [1], [0, 0, 1, 1], [], []>} : vector<3x18xf32>, vector<18x64xf32>, vector<3x64xf32> -> vector<3x64xf32>
    %c0_4 = arith.constant 0 : index
    %c0_5 = arith.constant 0 : index
    %4 = vector.load %arg4[%c0_4, %c0_5] : memref<3x1xf32, #tpu.memory_space<vmem>>, vector<3x1xf32>
    %5 = vector.broadcast %4 : vector<3x1xf32> to vector<3x64xf32>
    %6 = arith.addf %3, %5 : vector<3x64xf32>
    %c0_6 = arith.constant 0 : index
    %c0_7 = arith.constant 0 : index
    %c0_8 = arith.constant 0 : index
    %7 = vector.load %arg5[%c0_6, %c0_7, %c0_8] : memref<1x3x64xf32, #tpu.memory_space<vmem>>, vector<1x3x64xf32>
    %8 = vector.shape_cast %7 : vector<1x3x64xf32> to vector<3x64xf32>
    %9 = vector.shape_cast %6 : vector<3x64xf32> to vector<1x3x64xf32>
    tpu.vector_store %arg5[%c0_6, %c0_7, %c0_8], %9 {strides = array<i32>} : memref<1x3x64xf32, #tpu.memory_space<vmem>>, vector<1x3x64xf32>,
    return
  }
  func.func @transform_0(%arg0: i32, %arg1: i32) -> (i32, i32) {
    %c0_i32 = arith.constant 0 : i32
    %c0_i32_0 = arith.constant 0 : i32
    %c0_i32_1 = arith.constant 0 : i32
    return %c0_i32, %c0_i32_0 : i32, i32
  }
  func.func @transform_1(%arg0: i32, %arg1: i32) -> (i32, i32, i32) {
    %c0_i32 = arith.constant 0 : i32
    %c0_i32_0 = arith.constant 0 : i32
    return %arg0, %c0_i32, %arg1 : i32, i32, i32
  }
  func.func @transform_2(%arg0: i32, %arg1: i32) -> (i32, i32) {
    %c0_i32 = arith.constant 0 : i32
    %c0_i32_0 = arith.constant 0 : i32
    %c0_i32_1 = arith.constant 0 : i32
    return %c0_i32, %c0_i32_0 : i32, i32
  }
  func.func @transform_3(%arg0: i32, %arg1: i32) -> (i32, i32, i32) {
    %c0_i32 = arith.constant 0 : i32
    %c0_i32_0 = arith.constant 0 : i32
    return %arg0, %c0_i32, %arg1 : i32, i32, i32
  }
}

</mosaic_0001>

<llo_original>
// kernel: custom_conv_transposed2d_forward.1
$region0: #{custom_conv_transposed2d_forward.1}
  #allocation0 [shape = 'u32[]', space=smem, size = 0x4, offset = 0x4, fixed_abs, tag = 'smem constant byte address 0x4 - core index']
  #allocation1 [shape = 'u32[72,128]{1,0:T(1,128)}', space=vmem, size = 0x9000, scoped, tag = 'internal scratch']
  %s0 = inlined_call_operand.vmem [shape: f32[3,18], index: 0, kind: input, shape index: {}]
  %s1 = inlined_call_operand.vmem [shape: f32[2,18,64], index: 1, kind: input, shape index: {}]
  %s2 = inlined_call_operand.vmem [shape: f32[3,1], index: 2, kind: input, shape index: {}]
  %s3 = inlined_call_operand.vmem [shape: f32[2,3,64], index: 3, kind: output, shape index: {}]
  %s4 = sld [smem:[#allocation0]]
  $region45: #{custom_conv_transposed2d_forward.1} parent=0
    _
  %s6 = ssub.s32 1, %s4
  %s7 = scalar_select 0, %s6, %s4
  loop: start=0, step=1, limit=4
  $region2: #{custom_conv_transposed2d_forward.1} parent=0 // loop_pre_header
    _
  $region3: #{custom_conv_transposed2d_forward.1} parent=0 // loop_header
    %s9 = sphi 0, %s13
    %p10 = scmp.ge.s32.totalorder %s9, 4
    %s16 = sphi 0, %s28
    %s17 = sphi 0, %s24
    %s18 = sphi 0, %s16
    %s19 = sphi 0, %s17
    %s20 = sphi 0, %s18
    %s21 = sphi 0, %s19
    %s29 = sphi 0, %s29
    %s31 = sphi 0, %s29
    %s32 = sphi 0, %s31
    %s46 = sphi 0, %s32
    %s54 = sphi 0, %s56
    %s57 = sphi 0, %s54
    %s58 = sphi 0, %s57
    %s74 = sphi 0, %s58
    %s78 = sphi 0, %s78
    %s80 = sphi 0, %s78
    %s81 = sphi 0, %s80
    %s95 = sphi 0, %s81
    %s103 = sphi 0, %s105
    %s106 = sphi 0, %s103
    %s107 = sphi 0, %s106
    %s123 = sphi 0, %s107
  $region4: #{custom_conv_transposed2d_forward.1} parent=0 // loop_header_branch
    %12 = sbr.rel (%p10) target = $region8
  $region5: #{custom_conv_transposed2d_forward.1} parent=0 // loop_body
    %s14 = ssub.s32 %s9, 1
    %s15 = ssub.s32 %s9, 2
    %s22 = sadd.s32 1, %s17
    %p23 = scmp.ge.s32.totalorder %s22, 1
    %s24 = scalar_select %p23, 0, %s22
    %s25 = sadd.s32 1, %s16
    %s26 = scalar_select %p23, %s25, %s16
    %p27 = scmp.ge.s32.totalorder %s26, 2
    %s28 = scalar_select %p27, 0, %s26
    %s30 = sadd.s32 %s29, 1
    %p33 = scmp.eq.s32.totalorder %s9, 1
    %p34 = scmp.ne.s32.totalorder %s29, %s31
    %p35 = scmp.eq.s32.totalorder %s9, 0
    %p36 = por %p34, %p35
    %p37 = scmp.ne.s32.totalorder %s29, %s31
    %p38 = scmp.eq.s32.totalorder %s14, 1
    %p39 = por %p37, %p38
    %p40 = scmp.ne.s32.totalorder %s31, %s32
    %p41 = scmp.eq.s32.totalorder %s14, 0
    %p42 = por %p40, %p41
    %p43 = scmp.ne.s32.totalorder %s31, %s32
    %p44 = scmp.eq.s32.totalorder %s15, 1
    %p45 = por %p43, %p44
    %p47 = scmp.ne.s32.totalorder %s32, %s46
    %p48 = scmp.eq.s32.totalorder %s15, 0
    %p49 = por %p47, %p48
    %s50 = ssub.s32 %s16, %s28
    %s51 = ssub.s32 %s17, %s24
    %s52 = sor.u32 %s50, %s51
    %p53 = scmp.eq.s32.totalorder %s52, 0
    %s55 = sadd.s32 %s54, 1
    %s56 = scalar_select %p53, %s54, %s55
    %p59 = pneg %p53
    %p60 = scmp.eq.s32.totalorder %s9, 1
    %p61 = por %p59, %p60
    %p62 = scmp.ne.s32.totalorder %s54, %s57
    %p63 = scmp.eq.s32.totalorder %s9, 0
    %p64 = por %p62, %p63
    %p65 = scmp.ne.s32.totalorder %s54, %s57
    %p66 = scmp.eq.s32.totalorder %s14, 1
    %p67 = por %p65, %p66
    %p68 = scmp.ne.s32.totalorder %s57, %s58
    %p69 = scmp.eq.s32.totalorder %s14, 0
    %p70 = por %p68, %p69
    %p71 = scmp.ne.s32.totalorder %s57, %s58
    %p72 = scmp.eq.s32.totalorder %s15, 1
    %p73 = por %p71, %p72
    %p75 = scmp.ne.s32.totalorder %s58, %s74
    %p76 = scmp.eq.s32.totalorder %s15, 0
    %p77 = por %p75, %p76
    %s79 = sadd.s32 %s78, 1
    %p82 = scmp.eq.s32.totalorder %s9, 1
    %p83 = scmp.ne.s32.totalorder %s78, %s80
    %p84 = scmp.eq.s32.totalorder %s9, 0
    %p85 = por %p83, %p84
    %p86 = scmp.ne.s32.totalorder %s78, %s80
    %p87 = scmp.eq.s32.totalorder %s14, 1
    %p88 = por %p86, %p87
    %p89 = scmp.ne.s32.totalorder %s80, %s81
    %p90 = scmp.eq.s32.totalorder %s14, 0
    %p91 = por %p89, %p90
    %p92 = scmp.ne.s32.totalorder %s80, %s81
    %p93 = scmp.eq.s32.totalorder %s15, 1
    %p94 = por %p92, %p93
    %p96 = scmp.ne.s32.totalorder %s81, %s95
    %p97 = scmp.eq.s32.totalorder %s15, 0
    %p98 = por %p96, %p97
    %s99 = ssub.s32 %s16, %s28
    %s100 = ssub.s32 %s17, %s24
    %s101 = sor.u32 %s99, %s100
    %p102 = scmp.eq.s32.totalorder %s101, 0
    %s104 = sadd.s32 %s103, 1
    %s105 = scalar_select %p102, %s103, %s104
    %p108 = pneg %p102
    %p109 = scmp.eq.s32.totalorder %s9, 1
    %p110 = por %p108, %p109
    %p111 = scmp.ne.s32.totalorder %s103, %s106
    %p112 = scmp.eq.s32.totalorder %s9, 0
    %p113 = por %p111, %p112
    %p114 = scmp.ne.s32.totalorder %s103, %s106
    %p115 = scmp.eq.s32.totalorder %s14, 1
    %p116 = por %p114, %p115
    %p117 = scmp.ne.s32.totalorder %s106, %s107
    %p118 = scmp.eq.s32.totalorder %s14, 0
    %p119 = por %p117, %p118
    %p120 = scmp.ne.s32.totalorder %s106, %s107
    %p121 = scmp.eq.s32.totalorder %s15, 1
    %p122 = por %p120, %p121
    %p124 = scmp.ne.s32.totalorder %s107, %s123
    %p125 = scmp.eq.s32.totalorder %s15, 0
    %p126 = por %p124, %p125
    %p127 = scmp.le.s32.totalorder 1, %s9
    %p128 = scmp.lt.s32.totalorder %s9, 3
    %p129 = pnand %p127, %p128
    %p130 = pneg %p129
    // Predicated region
    $region9: #{custom_conv_transposed2d_forward.1} parent=5 // pred_check
      _
    $region10: #{custom_conv_transposed2d_forward.1} parent=5 // pred_check_branch
      %132 = sbr.rel (%p129) target = $region12
    $region11: #{custom_conv_transposed2d_forward.1} parent=5 // pred_region
      %s133 = ssub.s32 %s9, 1
      // Predicated region
      $region13: #{custom_conv_transposed2d_forward.1} parent=11 // pred_check
        %p134 = pneg %p42
      $region14: #{custom_conv_transposed2d_forward.1} parent=11 // pred_check_branch
        %136 = sbr.rel (%p134) target = $region16
      $region15: #{custom_conv_transposed2d_forward.1} parent=11 // pred_region
        _
      $region16: #{custom_conv_transposed2d_forward.1} parent=11 // pred_fallthru
        _
      // Predicated region
      $region17: #{custom_conv_transposed2d_forward.1} parent=11 // pred_check
        %p137 = pneg %p91
      $region18: #{custom_conv_transposed2d_forward.1} parent=11 // pred_check_branch
        %139 = sbr.rel (%p137) target = $region20
      $region19: #{custom_conv_transposed2d_forward.1} parent=11 // pred_region
        _
      $region20: #{custom_conv_transposed2d_forward.1} parent=11 // pred_fallthru
        _
    $region12: #{custom_conv_transposed2d_forward.1} parent=5 // pred_fallthru
      _
    %p140 = scmp.lt.s32.totalorder %s9, 2
    // Predicated region
    $region21: #{custom_conv_transposed2d_forward.1} parent=5 // pred_check
      %p141 = pneg %p140
    $region22: #{custom_conv_transposed2d_forward.1} parent=5 // pred_check_branch
      %143 = sbr.rel (%p141) target = $region24
    $region23: #{custom_conv_transposed2d_forward.1} parent=5 // pred_region
      // Predicated region
      $region25: #{custom_conv_transposed2d_forward.1} parent=23 // pred_check
        %p144 = pneg %p64
      $region26: #{custom_conv_transposed2d_forward.1} parent=23 // pred_check_branch
        %146 = sbr.rel (%p144) target = $region28
      $region27: #{custom_conv_transposed2d_forward.1} parent=23 // pred_region
        %p147 = scmp.lt.s32.totalorder %s16, 1
        %s148 = scalar_select %p147, %s16, 1
        %p149 = scmp.lt.s32.totalorder %s17, 0
        %s150 = scalar_select %p149, %s17, 0
        %s151 = smul.addr %s148, 3
        %s152 = sadd.s32 %s150, %s151
        %s153 = smul.addr %s152, 8
        %s154 = scalar_lea.vmem %s1, %s153
      $region28: #{custom_conv_transposed2d_forward.1} parent=23 // pred_fallthru
        _
    $region24: #{custom_conv_transposed2d_forward.1} parent=5 // pred_fallthru
      _
    %p155 = scmp.le.s32.totalorder 1, %s9
    %p156 = scmp.lt.s32.totalorder %s9, 3
    %p157 = pnand %p155, %p156
    %p158 = pneg %p157
    // Predicated region
    $region29: #{custom_conv_transposed2d_forward.1} parent=5 // pred_check
      _
    $region30: #{custom_conv_transposed2d_forward.1} parent=5 // pred_check_branch
      %160 = sbr.rel (%p157) target = $region32
    $region31: #{custom_conv_transposed2d_forward.1} parent=5 // pred_region
      %s161 = ssub.s32 %s9, 1
      %p162 = pneg %p42
      %p163 = pneg %p39
      %p164 = scmp.lt.s32.totalorder %s18, 1
      %s165 = scalar_select %p164, %s18, 1
      %p166 = scmp.lt.s32.totalorder %s19, 0
      %s167 = scalar_select %p166, %s19, 0
      %s168 = smul.addr %s165, 3
      %s169 = sadd.s32 %s167, %s168
      %s170 = smul.addr %s169, 8
      %s171 = scalar_lea.vmem %s1, %s170
      %p172 = pneg %p70
      %p173 = pneg %p67
      %p174 = pneg %p91
      %p175 = pneg %p88
      %p176 = pneg %p119
      %p177 = pneg %p116
      %p178 = scmp.lt.s32.totalorder %s18, 1
      %s179 = scalar_select %p178, %s18, 1
      %p180 = scmp.lt.s32.totalorder %s19, 0
      %s181 = scalar_select %p180, %s19, 0
      %s182 = sadd.s32 %s181, %s179
      %s183 = smul.addr %s182, 4
      %s184 = scalar_lea.vmem %s3, %s183
      %p185 = scmp.lt.s32.totalorder %s18, 1
      %s186 = scalar_select %p185, %s18, 1
      %p187 = scmp.lt.s32.totalorder %s19, 0
      %s188 = scalar_select %p187, %s19, 0
      %s189 = smul.addr %s186, 3
      %s190 = sadd.s32 %s188, %s189
      %s191 = smul.addr %s190, 8
      %s192 = scalar_lea.vmem %s1, %s191
      %p193 = scmp.lt.s32.totalorder %s18, 1
      %s194 = scalar_select %p193, %s18, 1
      %p195 = scmp.lt.s32.totalorder %s19, 0
      %s196 = scalar_select %p195, %s19, 0
      %s197 = sadd.s32 %s196, %s194
      %s198 = smul.addr %s197, 4
      %s199 = scalar_lea.vmem %s3, %s198
      %v200 = vld [vmem:[%s0] sm:$0x7]
      %v201 = vld [vmem:[%s192] sm:$0xff]
      %v202 = vld [vmem:[%s192 + $0x8] sm:$0xff]
      %v203 = vld [vmem:[%s192 + $0x10] sm:$0x3]
      %v204 = vld [vmem:[%s2] sm:$0x7]
      %206 = vset.pattern.permute.xlu0 0
      %207 = vperm.xlu0 %206, %v204
      %v208 = vpop.permute.xlu0 %207
      %vm210 = vcmask 146432
      %v212 = vsel %vm210, %v200, 0
      %vm214 = vcmask 1041408
      %v216 = vsel %vm214, %v203, 0
      %218 = vmatpush.msra.mxu0 0.0
      %219 = vmatpush.msra.mxu0 0.0
      %220 = vmatpush.msra.mxu0 0.0
      %221 = vmatpush.msra.mxu0 0.0
      %222 = vmatpush.msra.mxu0 0.0
      %223 = vmatpush.msra.mxu0 0.0
      %224 = vmatpush.msra.mxu0 0.0
      %225 = vmatpush.msra.mxu0 0.0
      %226 = vmatpush.msra.mxu0 0.0
      %227 = vmatpush.msra.mxu0 0.0
      %228 = vmatpush.msra.mxu0 0.0
      %229 = vmatpush.msra.mxu0 0.0
      %230 = vmatpush.msra.mxu0 0.0
      %231 = vmatpush.msra.mxu0 %v216
      %232 = vmatpush.msra.mxu0 %v202
      %233 = vmatpush.msra.mxu0 %v201
      %234 = vmatmul.f32.gmra.mxu0 %v212
      %v235 = vpop.f32.mrf.mxu0
      %v236 = vadd.f32 %v208, %v235
      %237 = vdwg.mxu0
      %vm238 = vcmask 518144
      %239 = vst.msk [vmem:[%s199] sm:$0x7] %vm238, %v236
      %p240 = scmp.lt.s32.totalorder %s18, 1
      %s241 = scalar_select %p240, %s18, 1
      %p242 = scmp.lt.s32.totalorder %s19, 0
      %s243 = scalar_select %p242, %s19, 0
      %s244 = sadd.s32 %s243, %s241
      %s245 = smul.addr %s244, 4
      %s246 = scalar_lea.vmem %s3, %s245
      // Predicated region
      $region33: #{custom_conv_transposed2d_forward.1} parent=31 // pred_check
        %p247 = pneg %p116
      $region34: #{custom_conv_transposed2d_forward.1} parent=31 // pred_check_branch
        %249 = sbr.rel (%p247) target = $region36
      $region35: #{custom_conv_transposed2d_forward.1} parent=31 // pred_region
        _
      $region36: #{custom_conv_transposed2d_forward.1} parent=31 // pred_fallthru
        _
    $region32: #{custom_conv_transposed2d_forward.1} parent=5 // pred_fallthru
      _
    %p250 = scmp.le.s32.totalorder 2, %s9
    // Predicated region
    $region37: #{custom_conv_transposed2d_forward.1} parent=5 // pred_check
      %p251 = pneg %p250
    $region38: #{custom_conv_transposed2d_forward.1} parent=5 // pred_check_branch
      %253 = sbr.rel (%p251) target = $region40
    $region39: #{custom_conv_transposed2d_forward.1} parent=5 // pred_region
      %s254 = ssub.s32 %s9, 2
      // Predicated region
      $region41: #{custom_conv_transposed2d_forward.1} parent=39 // pred_check
        %p255 = pneg %p122
      $region42: #{custom_conv_transposed2d_forward.1} parent=39 // pred_check_branch
        %257 = sbr.rel (%p255) target = $region44
      $region43: #{custom_conv_transposed2d_forward.1} parent=39 // pred_region
        %p258 = scmp.lt.s32.totalorder %s20, 1
        %s259 = scalar_select %p258, %s20, 1
        %p260 = scmp.lt.s32.totalorder %s21, 0
        %s261 = scalar_select %p260, %s21, 0
        %s262 = sadd.s32 %s261, %s259
        %s263 = smul.addr %s262, 4
        %s264 = scalar_lea.vmem %s3, %s263
      $region44: #{custom_conv_transposed2d_forward.1} parent=39 // pred_fallthru
        _
    $region40: #{custom_conv_transposed2d_forward.1} parent=5 // pred_fallthru
      _
  $region6: #{custom_conv_transposed2d_forward.1} parent=0 // loop_footer
    %s13 = sadd.s32 1, %s9
  $region7: #{custom_conv_transposed2d_forward.1} parent=0 // loop_footer_branch
    %8 = sbr.rel target = $region3
  $region8: #{custom_conv_transposed2d_forward.1} parent=0 // loop_exit
    _

</llo_original>
